<compile_context>
chip_gen: v6e
topology: v6e:2x2x1
jax: 0.10.0
libtpu: 0.0.40
codegen_flags: <defaults>
</compile_context>

<pallas_src>
import math

import jax
import jax.numpy as jnp
import numpy as np
from jax.experimental import pallas as pl
from jax.experimental.pallas import tpu as pltpu

_LANE = 128
_SUB = 8


def _round_up(x, m):
    return ((x + m - 1) // m) * m


def _make_kernel(b_pad, k, half, w, r_freqs, r_w1, r_b1, r_w2h, r_b2h):
    """Build the fused kernel with all section offsets baked in as constants."""

    def kernel(t_ref, slab_ref, out_ref):
        # ---- timestep embedding over one K-wide slice (no sin||cos concat) ----
        # arg ordering matches the reference exactly: (5000*t) * freqs
        freqs = slab_ref[r_freqs:r_freqs + 1, 0:k]                  # (1, K)
        arg = (t_ref[...] * 5000.0) * freqs                          # (B, K)
        lane = jax.lax.broadcasted_iota(jnp.int32, (b_pad, k), 1)
        emb = jnp.where(lane < half, jnp.sin(arg), jnp.cos(arg))     # (B, K)

        # ---- linear_1 (single K-wide MXU matmul) + SiLU ----
        h = jnp.dot(emb, slab_ref[r_w1:r_w1 + k, :],
                    preferred_element_type=jnp.float32)
        if b_pad == _SUB:
            h = h + slab_ref[r_b1:r_b1 + _SUB, :]        # bias pre-replicated: no sublane bcast
        else:
            h = h + slab_ref[r_b1:r_b1 + 1, :]
        h = h * jax.nn.sigmoid(h)

        # ---- linear_2 folded into the fused scale||shift head at pack time ----
        #   (h @ W2 + b2) @ Whead + bhead == h @ (W2 @ Whead) + (b2 @ Whead + bhead)
        o = jnp.dot(h, slab_ref[r_w2h:r_w2h + w, :],
                    preferred_element_type=jnp.float32)
        if b_pad == _SUB:
            o = o + slab_ref[r_b2h:r_b2h + _SUB, :]
        else:
            o = o + slab_ref[r_b2h:r_b2h + 1, :]
        out_ref[...] = o                                             # lane-dense (B, W) vst

    return kernel


def pack_params(params, embed_channels):
    """One-time conversion of canonical params into a single kernel-ready slab.

    Weight layout convention: Linear weights are [in_features, out_features]
    (i.e. PyTorch W.T) so the kernel computes y = x @ W + b.
    """
    assert embed_channels % 2 == 0, "odd embed_channels not supported"
    half = embed_channels // 2
    hidden = embed_channels * 4
    out_channels = params["ws"].shape[1]
    two_out = 2 * out_channels
    k = embed_channels

    # frequency table: identical f32 expression to the reference (bit parity).
    denom = max(half - 1, 1)                       # guard embed_channels == 2
    emb_scale = math.log(10000.0) / float(denom)
    freqs = jnp.exp(jnp.arange(half, dtype=jnp.float32) * -emb_scale)
    freqs_dup = np.concatenate([np.asarray(freqs), np.asarray(freqs)])   # (K,)

    # fold linear_2 into the fused head, in float64 for an exactly-rounded result.
    w2 = np.asarray(params["w2"], np.float64)                         # (hidden, hidden)
    b2 = np.asarray(params["b2"], np.float64)                         # (1, hidden)
    w_head = np.concatenate([np.asarray(params["ws"], np.float64),
                             np.asarray(params["wh"], np.float64)], axis=1)   # (hidden, 2*out)
    b_head = np.concatenate([np.asarray(params["bs"], np.float64),
                             np.asarray(params["bh"], np.float64)], axis=1)   # (1, 2*out)
    w2h = w2 @ w_head                                                  # (hidden, 2*out)
    b2h = b2 @ w_head + b_head                                         # (1, 2*out)

    # ---- single contiguous (rows, W) slab, each section 8-sublane aligned ----
    k_pad = _round_up(k, _SUB)
    w = _round_up(max(hidden, two_out), _LANE)

    r_freqs = 0
    r_w1 = r_freqs + _SUB
    r_b1 = r_w1 + k_pad
    r_w2h = r_b1 + _SUB
    r_b2h = r_w2h + w
    rows = r_b2h + _SUB

    slab = np.zeros((rows, w), np.float64)
    slab[r_freqs, :k] = freqs_dup
    slab[r_w1:r_w1 + k, :hidden] = np.asarray(params["w1"], np.float64)
    slab[r_b1:r_b1 + _SUB, :hidden] = np.asarray(params["b1"], np.float64)   # replicated x8
    slab[r_w2h:r_w2h + hidden, :two_out] = w2h
    slab[r_b2h:r_b2h + _SUB, :two_out] = b2h                                 # replicated x8

    meta = dict(k=k, half=half, hidden=hidden, two_out=two_out,
                out_channels=out_channels, w=w,
                r_freqs=r_freqs, r_w1=r_w1, r_b1=r_b1,
                r_w2h=r_w2h, r_b2h=r_b2h)
    return dict(slab=jnp.asarray(slab, jnp.float32), meta=meta)


def dense_film_forward(t, packed):
    """t: [B, 1] float32 timesteps. packed: output of pack_params()."""
    meta = packed["meta"]
    slab = packed["slab"]

    b = t.shape[0]
    b_pad = _round_up(max(b, _SUB), _SUB)          # keep vregs/stores fully dense
    t = t.astype(jnp.float32)
    if b_pad != b:
        t = jnp.pad(t, ((0, b_pad - b), (0, 0)))

    k, half, w = meta["k"], meta["half"], meta["w"]
    kernel = _make_kernel(b_pad, k, half, w,
                          meta["r_freqs"], meta["r_w1"], meta["r_b1"],
                          meta["r_w2h"], meta["r_b2h"])

    # cost estimate for the folded / fused kernel (2 matmuls, 1 slab DMA)
    flops = 2 * b_pad * (k * w + w * w)
    transcendentals = b_pad * (2 * k + w)                 # sin + cos + sigmoid(exp)
    bytes_accessed = 4 * (int(slab.size) + int(t.size) + b_pad * w)

    vmem = pl.BlockSpec(memory_space=pltpu.MemorySpace.VMEM)
    fused = pl.pallas_call(
        kernel,
        out_shape=jax.ShapeDtypeStruct((b_pad, w), jnp.float32),
        in_specs=[vmem, vmem],
        out_specs=vmem,
        cost_estimate=pl.CostEstimate(
            flops=flops,
            transcendentals=transcendentals,
            bytes_accessed=bytes_accessed,
        ),
    )(t, slab)

    # zero-cost split of the fused lane-dense head output
    out = meta["out_channels"]
    scale = fused[:b, :out]
    shift = fused[:b, out:2 * out]
    return scale, shift


def init_dense_film_params(key, embed_channels, out_channels):
    """Deterministic synthetic params. Weights stored as [in, out] (= torch W.T)."""
    hidden = embed_channels * 4
    keys = jax.random.split(key, 8)

    def lin(kw, kb, fan_in, fan_out):
        bound = 1.0 / math.sqrt(fan_in)
        w = jax.random.uniform(kw, (fan_in, fan_out), jnp.float32, -bound, bound)
        b = jax.random.uniform(kb, (1, fan_out), jnp.float32, -bound, bound)
        return w, b

    w1, b1 = lin(keys[0], keys[1], embed_channels, hidden)
    w2, b2 = lin(keys[2], keys[3], hidden, hidden)
    ws, bs = lin(keys[4], keys[5], hidden, out_channels)
    wh, bh = lin(keys[6], keys[7], hidden, out_channels)
    return dict(w1=w1, b1=b1, w2=w2, b2=b2, ws=ws, bs=bs, wh=wh, bh=bh)


def _reference_forward(t, params, embed_channels):
    """Pure-JAX reference mirroring the PyTorch forward, for verification."""
    noise = jnp.squeeze(t, -1)                              # (B,)
    half_dim = embed_channels // 2
    emb_scale = math.log(10000.0) / float(half_dim - 1)
    freqs = jnp.exp(jnp.arange(half_dim, dtype=jnp.float32) * -emb_scale)
    arg = 5000.0 * noise[:, None] * freqs[None, :]
    emb = jnp.concatenate([jnp.sin(arg), jnp.cos(arg)], axis=1)
    h = emb @ params["w1"] + params["b1"]
    h = h * jax.nn.sigmoid(h)
    h = h @ params["w2"] + params["b2"]
    scale = h @ params["ws"] + params["bs"]
    shift = h @ params["wh"] + params["bh"]
    return scale, shift


if __name__ == "__main__":
    EMBED_CHANNELS = 32
    OUT_CHANNELS = 64
    BATCH = 8

    key = jax.random.PRNGKey(0)
    k_params, k_t = jax.random.split(key)
    params = init_dense_film_params(k_params, EMBED_CHANNELS, OUT_CHANNELS)
    packed = pack_params(params, EMBED_CHANNELS)
    # timesteps in [0, 1), shaped [B, 1] like the PyTorch input (squeeze(-1) inside)
    t = jax.random.uniform(k_t, (BATCH, 1), jnp.float32)

    scale, shift = dense_film_forward(t, packed)
    jax.block_until_ready((scale, shift))

    ref_scale, ref_shift = _reference_forward(t, params, EMBED_CHANNELS)
    np.testing.assert_allclose(np.asarray(scale), np.asarray(ref_scale),
                               rtol=1e-5, atol=1e-5)
    np.testing.assert_allclose(np.asarray(shift), np.asarray(ref_shift),
                               rtol=1e-5, atol=1e-5)

    print("KERNEL_OK")
</pallas_src>

<mosaic_0001>
module attributes {stable_mosaic.version = 11 : i64} {
  func.func @kernel(%arg0: memref<8x1xf32, #tpu.memory_space<vmem>>, %arg1: memref<184x128xf32, #tpu.memory_space<vmem>>, %arg2: memref<8x128xf32, #tpu.memory_space<vmem>>) attributes {dimension_semantics = [], scalar_prefetch = 0 : i64, scratch_operands = 0 : i64, tpu.core_type = #tpu.core_type<tc>} {
    %c0 = arith.constant 0 : index
    %c0_0 = arith.constant 0 : index
    %0 = vector.load %arg1[%c0, %c0_0] : memref<184x128xf32, #tpu.memory_space<vmem>>, vector<1x32xf32>
    %c0_1 = arith.constant 0 : index
    %c0_2 = arith.constant 0 : index
    %1 = vector.load %arg0[%c0_1, %c0_2] : memref<8x1xf32, #tpu.memory_space<vmem>>, vector<8x1xf32>
    %cst = arith.constant 5.000000e+03 : f32
    %2 = vector.broadcast %cst : f32 to vector<8x1xf32>
    %3 = arith.mulf %1, %2 : vector<8x1xf32>
    %4 = vector.broadcast %3 : vector<8x1xf32> to vector<8x32xf32>
    %5 = vector.broadcast %0 : vector<1x32xf32> to vector<8x32xf32>
    %6 = arith.mulf %4, %5 : vector<8x32xf32>
    %7 = tpu.iota {dimensions = array<i32: 1>} : vector<8x32xi32>
    %c16_i32 = arith.constant 16 : i32
    %8 = vector.broadcast %c16_i32 : i32 to vector<8x32xi32>
    %9 = arith.cmpi slt, %7, %8 : vector<8x32xi32>
    %10 = math.sin %6 : vector<8x32xf32>
    %11 = math.cos %6 : vector<8x32xf32>
    %12 = arith.select %9, %10, %11 : vector<8x32xi1>, vector<8x32xf32>
    %c8 = arith.constant 8 : index
    %c0_3 = arith.constant 0 : index
    %13 = vector.load %arg1[%c8, %c0_3] : memref<184x128xf32, #tpu.memory_space<vmem>>, vector<32x128xf32>
    %cst_4 = arith.constant dense<0.000000e+00> : vector<8x128xf32>
    %14 = tpu.matmul %12, %13, %cst_4 {dimension_numbers = #tpu.dot_dimension_numbers<[1], [0], [0], [1], [0, 0, 1, 1], [], []>} : vector<8x32xf32>, vector<32x128xf32>, vector<8x128xf32> -> vector<8x128xf32>
    %c40 = arith.constant 40 : index
    %c0_5 = arith.constant 0 : index
    %15 = vector.load %arg1[%c40, %c0_5] : memref<184x128xf32, #tpu.memory_space<vmem>>, vector<8x128xf32>
    %16 = arith.addf %14, %15 : vector<8x128xf32>
    %17 = arith.negf %16 : vector<8x128xf32>
    %18 = math.exp %17 : vector<8x128xf32>
    %cst_6 = arith.constant 1.000000e+00 : f32
    %19 = vector.broadcast %cst_6 : f32 to vector<8x128xf32>
    %20 = arith.addf %19, %18 : vector<8x128xf32>
    %21 = arith.divf %19, %20 : vector<8x128xf32>
    %22 = arith.mulf %16, %21 : vector<8x128xf32>
    %c48 = arith.constant 48 : index
    %c0_7 = arith.constant 0 : index
    %23 = vector.load %arg1[%c48, %c0_7] : memref<184x128xf32, #tpu.memory_space<vmem>>, vector<128x128xf32>
    %cst_8 = arith.constant dense<0.000000e+00> : vector<8x128xf32>
    %24 = tpu.matmul %22, %23, %cst_8 {dimension_numbers = #tpu.dot_dimension_numbers<[1], [0], [0], [1], [0, 0, 1, 1], [], []>} : vector<8x128xf32>, vector<128x128xf32>, vector<8x128xf32> -> vector<8x128xf32>
    %c176 = arith.constant 176 : index
    %c0_9 = arith.constant 0 : index
    %25 = vector.load %arg1[%c176, %c0_9] : memref<184x128xf32, #tpu.memory_space<vmem>>, vector<8x128xf32>
    %26 = arith.addf %24, %25 : vector<8x128xf32>
    %c0_10 = arith.constant 0 : index
    %c0_11 = arith.constant 0 : index
    %27 = vector.load %arg2[%c0_10, %c0_11] : memref<8x128xf32, #tpu.memory_space<vmem>>, vector<8x128xf32>
    tpu.vector_store %arg2[%c0_10, %c0_11], %26 {strides = array<i32>} : memref<8x128xf32, #tpu.memory_space<vmem>>, vector<8x128xf32>,
    return
  }
}

</mosaic_0001>

<llo_original>
// kernel: tpu_custom_call.1
$region0: #{tpu_custom_call.1}
  #allocation0 [shape = 'u32[]', space=smem, size = 0x4, offset = 0x4, fixed_abs, tag = 'smem constant byte address 0x4 - core index']
  #allocation1 [shape = 'u32[144,128]{1,0:T(1,128)}', space=vmem, size = 0x12000, scoped, tag = 'internal scratch']
  %s0 = inlined_call_operand.vmem [shape: f32[8,1], index: 0, kind: input, shape index: {}]
  %s1 = inlined_call_operand.hbm [shape: f32[184,128], index: 1, kind: input, shape index: {}]
  %s2 = inlined_call_operand.hbm [shape: f32[8,128], index: 2, kind: output, shape index: {}]
  %s3 = sld [smem:[#allocation0]]
  $region22: #{tpu_custom_call.1} parent=0
    _
  %s5 = ssub.s32 1, %s3
  %s6 = scalar_select 0, %s5, %s3
  $region1: #{tpu_custom_call.1} parent=0
    #allocation2 [shape = 'u8[94208]{0}', space=vmem, size = 0x17000, scoped, tag = 'input window, operand 1, single buffered']
    #allocation3 [shape = 's32[1]{0}', space=sflag, size = 0x4, scoped, tag = 'scoped memory for tpu_custom_call.1']
    #allocation4 [shape = 's32[1]{0}', space=sflag, size = 0x4, scoped, tag = 'scoped memory for tpu_custom_call.1']
    #allocation5 [shape = 'u8[4096]{0}', space=vmem, size = 0x1000, scoped, tag = 'output window, operand 0, single buffered']
    %7 = vsyncpa [#allocation3], 0
    %8 = vsyncpa [#allocation4], 0
    // Predicated region
    $region2: #{tpu_custom_call.1} parent=1 // pred_check
      _
    $region3: #{tpu_custom_call.1} parent=1 // pred_check_branch
      %10 = sbr.rel (0) target = $region5
    $region4: #{tpu_custom_call.1} parent=1 // pred_region
      _
    $region5: #{tpu_custom_call.1} parent=1 // pred_fallthru
      _
    // Predicated region
    $region6: #{tpu_custom_call.1} parent=1 // pred_check
      _
    $region7: #{tpu_custom_call.1} parent=1 // pred_check_branch
      %12 = sbr.rel (0) target = $region9
    $region8: #{tpu_custom_call.1} parent=1 // pred_region
      %s14 = ssub.s32 2944, 2944
      %15 = vsyncadd [#allocation3], %s14
      %s16 = sshll.u32 [#allocation2], 4
      %s17 = int_to_ptr.vmem [resolvable:$true] %s16
      %22 = dma.hbm_to_vmem [thread:$0]  %s1, 2944, %s17, [#allocation3], 128, 128, 8
    $region9: #{tpu_custom_call.1} parent=1 // pred_fallthru
      _
    // Predicated region
    $region10: #{tpu_custom_call.1} parent=1 // pred_check
      _
    $region11: #{tpu_custom_call.1} parent=1 // pred_check_branch
      %24 = sbr.rel (0) target = $region13
    $region12: #{tpu_custom_call.1} parent=1 // pred_region
      %25 = dma.done [#allocation3], 2944
    $region13: #{tpu_custom_call.1} parent=1 // pred_fallthru
      _
    %v26 = vld [vmem:[#allocation2] sm:$0x1]
    %v27 = vld [vmem:[%s0] sm:$0xff]
    %v28 = vmul.f32 %v27, 5000.0
    %30 = vset.pattern.permute.xlu0 0
    %31 = vperm.xlu0 %30, %v28
    %v32 = vpop.permute.xlu0 %31
    %v34 = vlaneseq
    %v35 = vshrl.u32 %v34, 7
    %v36 = vsub.s32 0, %v35
    %v37 = vrot.slane %v26, %v36
    %v38 = vmul.f32 %v32, %v37
    %v39 = vlaneseq
    %v40 = vand.u32 %v39, 127
    %vm41 = vcmp.lt.s32.totalorder %v40, 16
    %v42 = vand.u32 2147483647, %v38
    %vm43 = vcmp.le.f32.partialorder %v42, 0.7853982
    %vm44 = vcmp.lt.s32.totalorder %v38, 0
    %v45 = vand.u32 %v38, 2139095040
    %v46 = vshrl.u32 %v45, 23
    %v47 = vsub.s32 %v46, 127
    %v48 = vand.u32 2147483647, %v38
    %v49 = vand.u32 %v48, 8388607
    %v50 = vor.u32 %v49, 8388608
    %v51 = vsub.s32 0, %v50
    %v52 = vadd.s32 %v47, 1
    %vm53 = vcmp.gt.s32.totalorder %v52, 0
    %v54 = vsel %vm53, %v52, 0
    %v55 = vshrl.u32 %v54, 5
    %v56 = vand.u32 %v54, 31
    %v57 = vsub.s32 32, %v56
    %v58 = vshrl.u32 683565275, %v57
    %v59 = vshll.u32 683565275, %v56
    %v60 = vshrl.u32 2475754826, %v57
    %v61 = vor.u32 %v59, %v60
    %v62 = vshll.u32 2475754826, %v56
    %v63 = vshrl.u32 2131351028, %v57
    %v64 = vor.u32 %v62, %v63
    %v65 = vshll.u32 2131351028, %v56
    %v66 = vshrl.u32 2102212464, %v57
    %v67 = vor.u32 %v65, %v66
    %v68 = vshll.u32 2102212464, %v56
    %v69 = vshrl.u32 920167782, %v57
    %v70 = vor.u32 %v68, %v69
    %v71 = vshll.u32 920167782, %v56
    %v72 = vshrl.u32 1326507024, %v57
    %v73 = vor.u32 %v71, %v72
    %vm74 = vcmp.lt.s32.totalorder %v55, 1
    %vm75 = vcmp.lt.s32.totalorder %v55, 2
    %vm76 = vcmp.lt.s32.totalorder %v55, 3
    %vm77 = vcmp.lt.s32.totalorder %v55, 4
    %v78 = vsel %vm74, %v58, %v61
    %v79 = vsel %vm77, %v67, 2102212464
    %v80 = vsel %vm76, %v64, %v79
    %v81 = vsel %vm75, %v78, %v80
    %v82 = vsel %vm74, %v61, %v64
    %v83 = vsel %vm77, %v70, 920167782
    %v84 = vsel %vm76, %v67, %v83
    %v85 = vsel %vm75, %v82, %v84
    %v86 = vsel %vm74, %v64, %v67
    %v87 = vsel %vm77, %v73, 1326507024
    %v88 = vsel %vm76, %v70, %v87
    %v89 = vsel %vm75, %v86, %v88
    %v90 = vshll.u32 %v50, 8
    %v91 = vmul.u32.u64.compose %v90, %v89
    %v92 = vextract.low.u32 %v91
    %v93 = vextract.high.u32 %v91
    %v94 = vmul.u32.u64.compose %v90, %v85
    %v95 = vextract.low.u32 %v94
    %v96 = vextract.high.u32 %v94
    %v97 = vmul.u32 %v90, %v81
    %v98 = vadd.s32 %v93, %v95
    %vm99 = vc.u32 %v93, %v95
    %v100 = vadd.s32 %v96, 1
    %v101 = vsel %vm99, %v100, %v96
    %v102 = vadd.s32 %v97, %v101
    %v103 = vadd.s32 %v102, 536870912
    %v104 = vshrl.u32 %v103, 30
    %v105 = vshll.u32 %v104, 30
    %v106 = vsub.s32 %v102, %v105
    %vm107 = vcmp.lt.s32.totalorder %v106, 0
    %v108 = vsub.s32 0, %v106
    %v109 = vsel %vm107, %v108, %v106
    %v110 = vclz %v109
    %v111 = vsub.s32 %v110, 2
    %vm112 = vcmp.gt.s32.totalorder 0, %v111
    %v113 = vsel %vm112, 0, %v111
    %v114 = vsub.s32 32, %v113
    %v115 = vshll.u32 %v106, %v113
    %v116 = vshrl.u32 %v98, %v114
    %v117 = vor.u32 %v115, %v116
    %v118 = vsub.s32 4294967266, %v113
    %v119 = vadd.s32 %v118, 127
    %v120 = vshll.u32 %v119, 23
    %v121 = vor.u32 4788187, %v120
    %v122 = vand.u32 2147483647, %v121
    %v124 = vcvt.s32.f32 %v117
    %v125 = vmul.f32 %v124, %v122
    %v126 = vxor.u32 %v125, 2147483648
    %v127 = vsel %vm44, %v126, %v125
    %v128 = vsub.s32 4, %v104
    %v129 = vsel %vm44, %v128, %v104
    %v130 = vsel %vm43, %v38, %v127
    %v131 = vsel %vm43, 0, %v129
    %v132 = vcosq.f32.pop %v130
    %v133 = vsinq.f32.pop %v130
    %vm134 = vweird.f32 %v38
    %v135 = vadd.s32 %v131, 3
    %v136 = vand.u32 %v135, 3
    %vm137 = vcmp.lt.s32.totalorder %v136, 2
    %vm138 = vcmp.eq.s32.totalorder %v136, 0
    %v139 = vxor.u32 %v133, 2147483648
    %v140 = vsel %vm138, %v132, %v139
    %vm141 = vcmp.eq.s32.totalorder %v136, 2
    %v142 = vxor.u32 %v132, 2147483648
    %v143 = vsel %vm141, %v142, %v133
    %v144 = vsel %vm137, %v140, %v143
    %v145 = vsel %vm134, nan, %v144
    %v146 = vand.u32 2147483647, %v38
    %vm147 = vcmp.le.f32.partialorder %v146, 0.7853982
    %vm148 = vcmp.lt.s32.totalorder %v38, 0
    %v149 = vand.u32 %v38, 2139095040
    %v150 = vshrl.u32 %v149, 23
    %v151 = vsub.s32 %v150, 127
    %v152 = vand.u32 2147483647, %v38
    %v153 = vand.u32 %v152, 8388607
    %v154 = vor.u32 %v153, 8388608
    %v155 = vsub.s32 0, %v154
    %v156 = vadd.s32 %v151, 1
    %vm157 = vcmp.gt.s32.totalorder %v156, 0
    %v158 = vsel %vm157, %v156, 0
    %v159 = vshrl.u32 %v158, 5
    %v160 = vand.u32 %v158, 31
    %v161 = vsub.s32 32, %v160
    %v162 = vshrl.u32 683565275, %v161
    %v163 = vshll.u32 683565275, %v160
    %v164 = vshrl.u32 2475754826, %v161
    %v165 = vor.u32 %v163, %v164
    %v166 = vshll.u32 2475754826, %v160
    %v167 = vshrl.u32 2131351028, %v161
    %v168 = vor.u32 %v166, %v167
    %v169 = vshll.u32 2131351028, %v160
    %v170 = vshrl.u32 2102212464, %v161
    %v171 = vor.u32 %v169, %v170
    %v172 = vshll.u32 2102212464, %v160
    %v173 = vshrl.u32 920167782, %v161
    %v174 = vor.u32 %v172, %v173
    %v175 = vshll.u32 920167782, %v160
    %v176 = vshrl.u32 1326507024, %v161
    %v177 = vor.u32 %v175, %v176
    %vm178 = vcmp.lt.s32.totalorder %v159, 1
    %vm179 = vcmp.lt.s32.totalorder %v159, 2
    %vm180 = vcmp.lt.s32.totalorder %v159, 3
    %vm181 = vcmp.lt.s32.totalorder %v159, 4
    %v182 = vsel %vm178, %v162, %v165
    %v183 = vsel %vm181, %v171, 2102212464
    %v184 = vsel %vm180, %v168, %v183
    %v185 = vsel %vm179, %v182, %v184
    %v186 = vsel %vm178, %v165, %v168
    %v187 = vsel %vm181, %v174, 920167782
    %v188 = vsel %vm180, %v171, %v187
    %v189 = vsel %vm179, %v186, %v188
    %v190 = vsel %vm178, %v168, %v171
    %v191 = vsel %vm181, %v177, 1326507024
    %v192 = vsel %vm180, %v174, %v191
    %v193 = vsel %vm179, %v190, %v192
    %v194 = vshll.u32 %v154, 8
    %v195 = vmul.u32.u64.compose %v194, %v193
    %v196 = vextract.low.u32 %v195
    %v197 = vextract.high.u32 %v195
    %v198 = vmul.u32.u64.compose %v194, %v189
    %v199 = vextract.low.u32 %v198
    %v200 = vextract.high.u32 %v198
    %v201 = vmul.u32 %v194, %v185
    %v202 = vadd.s32 %v197, %v199
    %vm203 = vc.u32 %v197, %v199
    %v204 = vadd.s32 %v200, 1
    %v205 = vsel %vm203, %v204, %v200
    %v206 = vadd.s32 %v201, %v205
    %v207 = vadd.s32 %v206, 536870912
    %v208 = vshrl.u32 %v207, 30
    %v209 = vshll.u32 %v208, 30
    %v210 = vsub.s32 %v206, %v209
    %vm211 = vcmp.lt.s32.totalorder %v210, 0
    %v212 = vsub.s32 0, %v210
    %v213 = vsel %vm211, %v212, %v210
    %v214 = vclz %v213
    %v215 = vsub.s32 %v214, 2
    %vm216 = vcmp.gt.s32.totalorder 0, %v215
    %v217 = vsel %vm216, 0, %v215
    %v218 = vsub.s32 32, %v217
    %v219 = vshll.u32 %v210, %v217
    %v220 = vshrl.u32 %v202, %v218
    %v221 = vor.u32 %v219, %v220
    %v222 = vsub.s32 4294967266, %v217
    %v223 = vadd.s32 %v222, 127
    %v224 = vshll.u32 %v223, 23
    %v225 = vor.u32 4788187, %v224
    %v226 = vand.u32 2147483647, %v225
    %v228 = vcvt.s32.f32 %v221
    %v229 = vmul.f32 %v228, %v226
    %v230 = vxor.u32 %v229, 2147483648
    %v231 = vsel %vm148, %v230, %v229
    %v232 = vsub.s32 4, %v208
    %v233 = vsel %vm148, %v232, %v208
    %v234 = vsel %vm147, %v38, %v231
    %v235 = vsel %vm147, 0, %v233
    %v236 = vcosq.f32.pop %v234
    %v237 = vsinq.f32.pop %v234
    %vm238 = vweird.f32 %v38
    %v239 = vand.u32 %v235, 3
    %vm240 = vcmp.lt.s32.totalorder %v239, 2
    %vm241 = vcmp.eq.s32.totalorder %v239, 0
    %v242 = vxor.u32 %v237, 2147483648
    %v243 = vsel %vm241, %v236, %v242
    %vm244 = vcmp.eq.s32.totalorder %v239, 2
    %v245 = vxor.u32 %v236, 2147483648
    %v246 = vsel %vm244, %v245, %v237
    %v247 = vsel %vm240, %v243, %v246
    %v248 = vsel %vm238, nan, %v247
    %v249 = vsel %vm41, %v145, %v248
    %v250 = vld [vmem:[#allocation2 + $0x8] sm:$0xff]
    %v251 = vld [vmem:[#allocation2 + $0x10] sm:$0xff]
    %v252 = vld [vmem:[#allocation2 + $0x18] sm:$0xff]
    %v253 = vld [vmem:[#allocation2 + $0x20] sm:$0xff]
    %v254 = vld [vmem:[#allocation2 + $0x28] sm:$0xff]
    %vm255 = vcmask 261120
    %v257 = vsel %vm255, %v249, 0
    %259 = vmatprep.subr.mxu0 0.0
    %260 = vmatpush1.msra.mxu0 0.0
    %261 = vmatprep.subr.mxu0 0.0
    %262 = vmatpush1.msra.mxu0 0.0
    %263 = vmatprep.subr.mxu0 0.0
    %264 = vmatpush1.msra.mxu0 0.0
    %265 = vmatprep.subr.mxu0 0.0
    %266 = vmatpush1.msra.mxu0 0.0
    %267 = vmatprep.subr.mxu0 0.0
    %268 = vmatpush1.msra.mxu0 0.0
    %269 = vmatprep.subr.mxu0 0.0
    %270 = vmatpush1.msra.mxu0 0.0
    %271 = vmatprep.subr.mxu0 0.0
    %272 = vmatpush1.msra.mxu0 0.0
    %273 = vmatprep.subr.mxu0 0.0
    %274 = vmatpush1.msra.mxu0 0.0
    %275 = vmatprep.subr.mxu0 0.0
    %276 = vmatpush1.msra.mxu0 0.0
    %277 = vmatprep.subr.mxu0 0.0
    %278 = vmatpush1.msra.mxu0 0.0
    %279 = vmatprep.subr.mxu0 0.0
    %280 = vmatpush1.msra.mxu0 0.0
    %281 = vmatprep.subr.mxu0 0.0
    %282 = vmatpush1.msra.mxu0 0.0
    %283 = vmatprep.subr.mxu0 0.0
    %284 = vmatpush1.msra.mxu0 %v253
    %285 = vmatprep.subr.mxu0 0.0
    %286 = vmatpush1.msra.mxu0 %v252
    %287 = vmatprep.subr.mxu0 0.0
    %288 = vmatpush1.msra.mxu0 %v251
    %289 = vmatprep.subr.mxu0 0.0
    %290 = vmatpush1.msra.mxu0 %v250
    %291 = vmatprep.subr.mxu0 0.0
    %292 = vmatpush2.msra.mxu0 0.0
    %293 = vmatprep.subr.mxu0 0.0
    %294 = vmatpush2.msra.mxu0 0.0
    %295 = vmatprep.subr.mxu0 0.0
    %296 = vmatpush2.msra.mxu0 0.0
    %297 = vmatprep.subr.mxu0 0.0
    %298 = vmatpush2.msra.mxu0 0.0
    %299 = vmatprep.subr.mxu0 0.0
    %300 = vmatpush2.msra.mxu0 0.0
    %301 = vmatprep.subr.mxu0 0.0
    %302 = vmatpush2.msra.mxu0 0.0
    %303 = vmatprep.subr.mxu0 0.0
    %304 = vmatpush2.msra.mxu0 0.0
    %305 = vmatprep.subr.mxu0 0.0
    %306 = vmatpush2.msra.mxu0 0.0
    %307 = vmatprep.subr.mxu0 0.0
    %308 = vmatpush2.msra.mxu0 0.0
    %309 = vmatprep.subr.mxu0 0.0
    %310 = vmatpush2.msra.mxu0 0.0
    %311 = vmatprep.subr.mxu0 0.0
    %312 = vmatpush2.msra.mxu0 0.0
    %313 = vmatprep.subr.mxu0 0.0
    %314 = vmatpush2.msra.mxu0 0.0
    %315 = vmatprep.subr.mxu0 0.0
    %316 = vmatpush2.msra.mxu0 0.0
    %317 = vmatprep.subr.mxu0 0.0
    %318 = vmatpush2.msra.mxu0 0.0
    %319 = vmatprep.subr.mxu0 0.0
    %320 = vmatpush2.msra.mxu0 0.0
    %321 = vmatprep.subr.mxu0 0.0
    %322 = vmatpush2.msra.mxu0 0.0
    %323 = vmatprep.mubr.f32.mxu0 0.0
    %324 = vmatmul.mubr.f32.gmra.mxu0 %v257
    %v325 = vpop.f32.mrf.mxu0
    %v326 = vadd.f32 %v254, %v325
    %v327 = vpop.f32.mrf.mxu0
    %328 = vdwg.mxu0
    %v329 = vxor.u32 %v326, 2147483648
    %v330 = vmul.f32 %v329, 1.442695
    %v331 = vpow.pop %v330
    %v332 = vadd.f32 %v331, 1.0
    %v333 = vrcp.pop %v332
    %v334 = vmul.f32 1.0, %v333
    %v335 = vmul.f32 %v326, %v334
    %v336 = vld [vmem:[#allocation2 + $0x30] sm:$0xff]
    %v337 = vld [vmem:[#allocation2 + $0x38] sm:$0xff]
    %v338 = vld [vmem:[#allocation2 + $0x40] sm:$0xff]
    %v339 = vld [vmem:[#allocation2 + $0x48] sm:$0xff]
    %v340 = vld [vmem:[#allocation2 + $0x50] sm:$0xff]
    %v341 = vld [vmem:[#allocation2 + $0x58] sm:$0xff]
    %v342 = vld [vmem:[#allocation2 + $0x60] sm:$0xff]
    %v343 = vld [vmem:[#allocation2 + $0x68] sm:$0xff]
    %v344 = vld [vmem:[#allocation2 + $0x70] sm:$0xff]
    %v345 = vld [vmem:[#allocation2 + $0x78] sm:$0xff]
    %v346 = vld [vmem:[#allocation2 + $0x80] sm:$0xff]
    %v347 = vld [vmem:[#allocation2 + $0x88] sm:$0xff]
    %v348 = vld [vmem:[#allocation2 + $0x90] sm:$0xff]
    %v349 = vld [vmem:[#allocation2 + $0x98] sm:$0xff]
    %v350 = vld [vmem:[#allocation2 + $0xa0] sm:$0xff]
    %v351 = vld [vmem:[#allocation2 + $0xa8] sm:$0xff]
    %v352 = vld [vmem:[#allocation2 + $0xb0] sm:$0xff]
    %353 = vmatprep.subr.mxu0 0.0
    %354 = vmatpush1.msra.mxu0 %v351
    %355 = vmatprep.subr.mxu0 0.0
    %356 = vmatpush1.msra.mxu0 %v350
    %357 = vmatprep.subr.mxu0 0.0
    %358 = vmatpush1.msra.mxu0 %v349
    %359 = vmatprep.subr.mxu0 0.0
    %360 = vmatpush1.msra.mxu0 %v348
    %361 = vmatprep.subr.mxu0 0.0
    %362 = vmatpush1.msra.mxu0 %v347
    %363 = vmatprep.subr.mxu0 0.0
    %364 = vmatpush1.msra.mxu0 %v346
    %365 = vmatprep.subr.mxu0 0.0
    %366 = vmatpush1.msra.mxu0 %v345
    %367 = vmatprep.subr.mxu0 0.0
    %368 = vmatpush1.msra.mxu0 %v344
    %369 = vmatprep.subr.mxu0 0.0
    %370 = vmatpush1.msra.mxu0 %v343
    %371 = vmatprep.subr.mxu0 0.0
    %372 = vmatpush1.msra.mxu0 %v342
    %373 = vmatprep.subr.mxu0 0.0
    %374 = vmatpush1.msra.mxu0 %v341
    %375 = vmatprep.subr.mxu0 0.0
    %376 = vmatpush1.msra.mxu0 %v340
    %377 = vmatprep.subr.mxu0 0.0
    %378 = vmatpush1.msra.mxu0 %v339
    %379 = vmatprep.subr.mxu0 0.0
    %380 = vmatpush1.msra.mxu0 %v338
    %381 = vmatprep.subr.mxu0 0.0
    %382 = vmatpush1.msra.mxu0 %v337
    %383 = vmatprep.subr.mxu0 0.0
    %384 = vmatpush1.msra.mxu0 %v336
    %385 = vmatprep.subr.mxu0 0.0
    %386 = vmatpush2.msra.mxu0 0.0
    %387 = vmatprep.subr.mxu0 0.0
    %388 = vmatpush2.msra.mxu0 0.0
    %389 = vmatprep.subr.mxu0 0.0
    %390 = vmatpush2.msra.mxu0 0.0
    %391 = vmatprep.subr.mxu0 0.0
    %392 = vmatpush2.msra.mxu0 0.0
    %393 = vmatprep.subr.mxu0 0.0
    %394 = vmatpush2.msra.mxu0 0.0
    %395 = vmatprep.subr.mxu0 0.0
    %396 = vmatpush2.msra.mxu0 0.0
    %397 = vmatprep.subr.mxu0 0.0
    %398 = vmatpush2.msra.mxu0 0.0
    %399 = vmatprep.subr.mxu0 0.0
    %400 = vmatpush2.msra.mxu0 0.0
    %401 = vmatprep.subr.mxu0 0.0
    %402 = vmatpush2.msra.mxu0 0.0
    %403 = vmatprep.subr.mxu0 0.0
    %404 = vmatpush2.msra.mxu0 0.0
    %405 = vmatprep.subr.mxu0 0.0
    %406 = vmatpush2.msra.mxu0 0.0
    %407 = vmatprep.subr.mxu0 0.0
    %408 = vmatpush2.msra.mxu0 0.0
    %409 = vmatprep.subr.mxu0 0.0
    %410 = vmatpush2.msra.mxu0 0.0
    %411 = vmatprep.subr.mxu0 0.0
    %412 = vmatpush2.msra.mxu0 0.0
    %413 = vmatprep.subr.mxu0 0.0
    %414 = vmatpush2.msra.mxu0 0.0
    %415 = vmatprep.subr.mxu0 0.0
    %416 = vmatpush2.msra.mxu0 0.0
    %417 = vmatprep.mubr.f32.mxu0 0.0
    %418 = vmatmul.mubr.f32.gmra.mxu0 %v335
    %v419 = vpop.f32.mrf.mxu0
    %v420 = vadd.f32 %v352, %v419
    %v421 = vpop.f32.mrf.mxu0
    %422 = vdwg.mxu0
    %423 = vst [vmem:[#allocation5] sm:$0xff] %v420
    // Predicated region
    $region14: #{tpu_custom_call.1} parent=1 // pred_check
      _
    $region15: #{tpu_custom_call.1} parent=1 // pred_check_branch
      %425 = sbr.rel (0) target = $region17
    $region16: #{tpu_custom_call.1} parent=1 // pred_region
      %s427 = ssub.s32 128, 128
      %428 = vsyncadd [#allocation4], %s427
      %s430 = sshll.u32 [#allocation5], 4
      %s431 = int_to_ptr.vmem [resolvable:$true] %s430
      %433 = dma.vmem_to_hbm [thread:$0]  %s431, 128, %s2, [#allocation4]
    $region17: #{tpu_custom_call.1} parent=1 // pred_fallthru
      _
    // Predicated region
    $region18: #{tpu_custom_call.1} parent=1 // pred_check
      _
    $region19: #{tpu_custom_call.1} parent=1 // pred_check_branch
      %435 = sbr.rel (0) target = $region21
    $region20: #{tpu_custom_call.1} parent=1 // pred_region
      %436 = dma.done [#allocation4], 128
    $region21: #{tpu_custom_call.1} parent=1 // pred_fallthru
      _
    %437 = vsyncpa [#allocation3], 1
    %438 = vsyncpa [#allocation4], 1

</llo_original>
